<compile_context>
chip_gen: v7x
topology: tpu7x:2x2x1
jax: 0.10.0
libtpu: 0.0.40
codegen_flags: <defaults>
</compile_context>

<pallas_src>
from functools import lru_cache, partial

import numpy as np
import jax
import jax.numpy as jnp
from jax.experimental import pallas as pl
from jax.experimental.pallas import tpu as pltpu

KERNEL_SIZE = 3
_LANE = 128
_SUBLANE = 8
_MAX_ROW_TILE = 4096              # hard cap on rows per block
_SMALL_FAST_PATH_BYTES = 1 << 20  # <= ~1 MiB of input -> pure-JAX fast path


def _round_up(x, m):
    return (x + m - 1) // m * m


@lru_cache(maxsize=1)
def _vmem_capacity_bytes():
    """Physical VMEM of the attached TPU; conservative (v7x) default on failure."""
    try:
        return int(pltpu.get_tpu_info().vmem_capacity_bytes)
    except Exception:
        return 64 << 20


def conv1d_sigmoid_kernel(w_ref, b_ref, x_ref, o_ref):
    """One (TN, Lp) block: valid 1-D conv (3 taps) + bias + sigmoid.

    w_ref: SMEM [3]        conv taps (f32)
    b_ref: SMEM [1]        conv bias (f32)
    x_ref: VMEM [TN, Lp]   input rows (lanes >= L; tail lanes are junk)
    o_ref: VMEM [TN, Lp]   output rows (only the first L-2 lanes are written
                           back to HBM by the partial-block DMA)
    """
    x = x_ref[...]
    lanes = x.shape[-1]  # static, multiple of 128

    # out[:, j] = b + sum_k w[k] * x[:, j + k]  for j < L-2.  pltpu.roll keeps
    # the tap shifts on the XLU, the VPU only does 3 FMAs (f32 via promotion),
    # and junk only ever lands in columns j >= L-2 which are never stored to HBM.
    acc = w_ref[0] * x
    for k in range(1, KERNEL_SIZE):
        acc = acc + w_ref[k] * pltpu.roll(x, shift=lanes - k, axis=1)

    o_ref[...] = jax.nn.sigmoid(acc + b_ref[0]).astype(o_ref.dtype)


def _conv1d_sigmoid_ref(x_ncl, weight, bias):
    """Pure-JAX reference / fallback of the PyTorch forward (f32 math)."""
    _, _, length = x_ncl.shape
    l_out = length - KERNEL_SIZE + 1
    x = x_ncl[:, 0, :].astype(jnp.float32)
    w = weight.reshape(KERNEL_SIZE).astype(jnp.float32)
    out = w[0] * x[:, :l_out]
    for k in range(1, KERNEL_SIZE):
        out = out + w[k] * x[:, k:k + l_out]
    out = jax.nn.sigmoid(out + bias.astype(jnp.float32)[0])
    return out[:, None, :]


@partial(jax.jit, static_argnames=("use_pallas", "out_dtype"))
def net1d_forward(x_ncl, weight, bias, *, use_pallas=None, out_dtype=None):
    """x_ncl: [N, 1, L]; weight: [1, 1, 3]; bias: [1] -> [N, 1, L-2].

    use_pallas: None = auto (tiny shapes use the pure-JAX path), True/False force.
    out_dtype:  None = same dtype as the input (f32 in -> f32 out).
    """
    n, c, length = x_ncl.shape
    assert c == 1 and length >= KERNEL_SIZE
    l_out = length - KERNEL_SIZE + 1
    if out_dtype is None:
        out_dtype = x_ncl.dtype

    # ---- dispatch & tile sizing (all static Python math) -------------------
    if use_pallas is None:
        use_pallas = n * length * x_ncl.dtype.itemsize > _SMALL_FAST_PATH_BYTES

    vmem_cap = _vmem_capacity_bytes()
    budget = min(vmem_cap // 3, 48 << 20)        # ~21 MiB v7x, ~42 MiB v5e/v6e
    vmem_limit = min(vmem_cap // 2, 96 << 20)    # headroom above the block budget

    l_pad = _round_up(length, _LANE)             # lane-dense VMEM block width
    in_b = x_ncl.dtype.itemsize
    out_b = np.dtype(out_dtype).itemsize
    # double-buffered in + out blocks + ~3 f32 whole-tile temporaries (acc,
    # rolled copy, sigmoid intermediate) per row of the block.
    per_row_bytes = l_pad * (2 * in_b + 2 * out_b + 3 * 4)

    if use_pallas and _SUBLANE * per_row_bytes > budget:
        # TODO(synk): halo-based lane tiling for very long L; fall back for now.
        use_pallas = False

    if not use_pallas:
        return _conv1d_sigmoid_ref(x_ncl, weight, bias).astype(out_dtype)

    tn = budget // per_row_bytes
    tn = min(tn, _MAX_ROW_TILE)
    n_ceil = _round_up(n, _SUBLANE)
    tn = min(tn, n_ceil)
    if n_ceil > _SUBLANE:
        # Aim for >= 4 row tiles so the "parallel" axis actually splits across
        # v7x's two TensorCores (harmless ~0.35 us/step on single-TC chips).
        tn = min(tn, max(_SUBLANE, _round_up(-(-n_ceil // 4), _SUBLANE)))
    tn = max(_SUBLANE, (tn // _SUBLANE) * _SUBLANE)

    # ---- pallas call (no HBM-side padding; partial blocks are DMA-masked) --
    x2d = x_ncl.reshape(n, length)                      # free metadata reshape
    w = weight.reshape(KERNEL_SIZE).astype(jnp.float32)
    b = bias.reshape(1).astype(jnp.float32)

    out2d = pl.pallas_call(
        conv1d_sigmoid_kernel,
        out_shape=jax.ShapeDtypeStruct((n, l_out), out_dtype),
        grid=(pl.cdiv(n, tn),),
        in_specs=[
            pl.BlockSpec(memory_space=pltpu.MemorySpace.SMEM),  # conv taps
            pl.BlockSpec(memory_space=pltpu.MemorySpace.SMEM),  # bias
            pl.BlockSpec((tn, l_pad), lambda i: (i, 0)),        # x row tile
        ],
        out_specs=pl.BlockSpec((tn, l_pad), lambda i: (i, 0)),  # lane-dense tile
        compiler_params=pltpu.CompilerParams(
            dimension_semantics=("parallel",),   # shard batch tiles across TCs
            vmem_limit_bytes=vmem_limit,
        ),
    )(w, b, x2d)

    return out2d.reshape(n, 1, l_out)


if __name__ == "__main__":
    key = jax.random.PRNGKey(0)
    k_x, k_w, k_b = jax.random.split(key, 3)

    # Module-implied shapes: x = [N, 1, 10], Conv1d weight = [1, 1, 3], bias = [1]
    N, L = 2, 10
    x = jax.random.normal(k_x, (N, 1, L), dtype=jnp.float32)
    # PyTorch default Conv1d init: uniform(+-1/sqrt(fan_in*k)) = +-1/sqrt(3)
    bound = 1.0 / float(np.sqrt(3.0))
    weight = jax.random.uniform(k_w, (1, 1, KERNEL_SIZE), minval=-bound, maxval=bound)
    bias = jax.random.uniform(k_b, (1,), minval=-bound, maxval=bound)

    ref = _conv1d_sigmoid_ref(x, weight, bias)

    # 1) Pallas kernel at the module's exact shape (force past the tiny-shape fast path).
    out = net1d_forward(x, weight, bias, use_pallas=True)
    jax.block_until_ready(out)
    assert out.shape == (N, 1, L - KERNEL_SIZE + 1), out.shape
    assert jnp.allclose(out, ref, atol=1e-5, rtol=1e-5), "pallas mismatch vs reference"

    # 2) Default dispatch (tiny-shape fast path) must agree as well.
    out_auto = net1d_forward(x, weight, bias)
    jax.block_until_ready(out_auto)
    assert jnp.allclose(out_auto, ref, atol=1e-5, rtol=1e-5), "fast-path mismatch"

    # 3) Slightly larger case: multiple row tiles + partial row/lane blocks.
    N2, L2 = 50, 200
    x2 = jax.random.normal(k_x, (N2, 1, L2), dtype=jnp.float32)
    out2 = net1d_forward(x2, weight, bias, use_pallas=True)
    jax.block_until_ready(out2)
    ref2 = _conv1d_sigmoid_ref(x2, weight, bias)
    assert out2.shape == (N2, 1, L2 - KERNEL_SIZE + 1), out2.shape
    assert jnp.allclose(out2, ref2, atol=1e-5, rtol=1e-5), "tiled pallas mismatch"

    print("KERNEL_OK")
</pallas_src>

<mosaic_0001>
module attributes {stable_mosaic.version = 11 : i64} {
  func.func @conv1d_sigmoid_kernel(%arg0: i32, %arg1: memref<3xf32, #tpu.memory_space<smem>>, %arg2: memref<1xf32, #tpu.memory_space<smem>>, %arg3: memref<8x128xf32, #tpu.memory_space<vmem>>, %arg4: memref<8x128xf32, #tpu.memory_space<vmem>>) attributes {dimension_semantics = [#tpu.dimension_semantics<parallel>], iteration_bounds = array<i64: 1>, scalar_prefetch = 0 : i64, scratch_operands = 0 : i64, tpu.core_type = #tpu.core_type<tc>, window_params = [{transform_indices = @transform_0, window_bounds = array<i64: 3>}, {transform_indices = @transform_1, window_bounds = array<i64: 1>}, {transform_indices = @transform_2, window_bounds = array<i64: 8, 128>}, {transform_indices = @transform_3, window_bounds = array<i64: 8, 128>}]} {
    %c0 = arith.constant 0 : index
    %c0_0 = arith.constant 0 : index
    %0 = vector.load %arg3[%c0, %c0_0] : memref<8x128xf32, #tpu.memory_space<vmem>>, vector<8x128xf32>
    %c0_1 = arith.constant 0 : index
    %1 = memref.load %arg1[%c0_1] : memref<3xf32, #tpu.memory_space<smem>>
    %2 = vector.broadcast %1 : f32 to vector<8x128xf32>
    %3 = arith.mulf %2, %0 : vector<8x128xf32>
    %c1 = arith.constant 1 : index
    %4 = memref.load %arg1[%c1] : memref<3xf32, #tpu.memory_space<smem>>
    %c127_i32 = arith.constant 127 : i32
    %5 = tpu.dynamic_rotate %0 by %c127_i32 dim 1 : vector<8x128xf32>, i32 -> vector<8x128xf32>
    %6 = vector.broadcast %4 : f32 to vector<8x128xf32>
    %7 = arith.mulf %6, %5 : vector<8x128xf32>
    %8 = arith.addf %3, %7 : vector<8x128xf32>
    %c2 = arith.constant 2 : index
    %9 = memref.load %arg1[%c2] : memref<3xf32, #tpu.memory_space<smem>>
    %c126_i32 = arith.constant 126 : i32
    %10 = tpu.dynamic_rotate %0 by %c126_i32 dim 1 : vector<8x128xf32>, i32 -> vector<8x128xf32>
    %11 = vector.broadcast %9 : f32 to vector<8x128xf32>
    %12 = arith.mulf %11, %10 : vector<8x128xf32>
    %13 = arith.addf %8, %12 : vector<8x128xf32>
    %c0_2 = arith.constant 0 : index
    %14 = memref.load %arg2[%c0_2] : memref<1xf32, #tpu.memory_space<smem>>
    %15 = vector.broadcast %14 : f32 to vector<8x128xf32>
    %16 = arith.addf %13, %15 : vector<8x128xf32>
    %17 = arith.negf %16 : vector<8x128xf32>
    %18 = math.exp %17 : vector<8x128xf32>
    %cst = arith.constant 1.000000e+00 : f32
    %19 = vector.broadcast %cst : f32 to vector<8x128xf32>
    %20 = arith.addf %19, %18 : vector<8x128xf32>
    %21 = arith.divf %19, %20 : vector<8x128xf32>
    %c0_3 = arith.constant 0 : index
    %c0_4 = arith.constant 0 : index
    %22 = vector.load %arg4[%c0_3, %c0_4] : memref<8x128xf32, #tpu.memory_space<vmem>>, vector<8x128xf32>
    tpu.vector_store %arg4[%c0_3, %c0_4], %21 {strides = array<i32>} : memref<8x128xf32, #tpu.memory_space<vmem>>, vector<8x128xf32>,
    return
  }
  func.func @transform_0(%arg0: i32) -> i32 {
    %c0_i32 = arith.constant 0 : i32
    %c0_i32_0 = arith.constant 0 : i32
    return %c0_i32 : i32
  }
  func.func @transform_1(%arg0: i32) -> i32 {
    %c0_i32 = arith.constant 0 : i32
    %c0_i32_0 = arith.constant 0 : i32
    return %c0_i32 : i32
  }
  func.func @transform_2(%arg0: i32) -> (i32, i32) {
    %c0_i32 = arith.constant 0 : i32
    %c0_i32_0 = arith.constant 0 : i32
    return %arg0, %c0_i32 : i32, i32
  }
  func.func @transform_3(%arg0: i32) -> (i32, i32) {
    %c0_i32 = arith.constant 0 : i32
    %c0_i32_0 = arith.constant 0 : i32
    return %arg0, %c0_i32 : i32, i32
  }
}

</mosaic_0001>

<llo_original>
// kernel: net1d_forward.1
$region0: #{net1d_forward.1}
  #allocation0 [shape = 'u32[]', space=smem, size = 0x4, offset = 0x4, fixed_abs, tag = 'smem constant byte address 0x4 - core index']
  #allocation1 [shape = 'u32[144,128]{1,0:T(1,128)}', space=vmem, size = 0x12000, scoped, tag = 'internal scratch']
  #allocation2 [shape = 'f32[1]{0:T(128)S(6)}', space=smem, size = 0x200, scoped, tag = 'scoped memory for net1d_forward.1']
  %s0 = inlined_call_operand.vmem [shape: f32[3], index: 0, kind: input, shape index: {}]
  %s1 = inlined_call_operand.<no memory space> [shape: f32[1], index: 1, kind: input, shape index: {}]
  %s2 = inlined_call_operand.vmem [shape: f32[2,10], index: 2, kind: input, shape index: {}]
  %s3 = inlined_call_operand.hbm [shape: f32[2,8], index: 3, kind: output, shape index: {}]
  %s4 = sld [smem:[#allocation0]]
  $region26: #{net1d_forward.1} parent=0
    _
  %s6 = ssub.s32 1, %s4
  %s7 = scalar_select 0, %s6, %s4
  %8 = sst [smem:[#allocation2]] %s1
  $region1: #{net1d_forward.1} parent=0
    #allocation3 [shape = 'u8[512]{0}', space=smem, size = 0x200, scoped, tag = 'input window, operand 0, single buffered']
    #allocation4 [shape = 's32[1]{0}', space=sflag, size = 0x4, scoped, tag = 'scoped memory for net1d_forward.1']
    #allocation5 [shape = 's32[1]{0}', space=sflag, size = 0x4, scoped, tag = 'scoped memory for net1d_forward.1']
    #allocation6 [shape = 'u8[4096]{0}', space=vmem, size = 0x1000, scoped, tag = 'output window, operand 0, single buffered']
    %9 = vsyncpa [#allocation5], 0
    %10 = vsyncpa [#allocation4], 0
    // Predicated region
    $region2: #{net1d_forward.1} parent=1 // pred_check
      _
    $region3: #{net1d_forward.1} parent=1 // pred_check_branch
      %12 = sbr.rel (0) target = $region5
    $region4: #{net1d_forward.1} parent=1 // pred_region
      %s14 = ssub.s32 16, 16
      %15 = vsyncadd [#allocation5], %s14
      %s17 = sshll.u32 %s0, 4
      %s18 = int_to_ptr.vmem [resolvable:$true] %s17
      %20 = dma.vmem_to_smem %s18, 16, [#allocation3], [#allocation5]
    $region5: #{net1d_forward.1} parent=1 // pred_fallthru
      _
    // Predicated region
    $region6: #{net1d_forward.1} parent=1 // pred_check
      _
    $region7: #{net1d_forward.1} parent=1 // pred_check_branch
      %22 = sbr.rel (0) target = $region9
    $region8: #{net1d_forward.1} parent=1 // pred_region
      _
    $region9: #{net1d_forward.1} parent=1 // pred_fallthru
      _
    // Predicated region
    $region10: #{net1d_forward.1} parent=1 // pred_check
      _
    $region11: #{net1d_forward.1} parent=1 // pred_check_branch
      %24 = sbr.rel (0) target = $region13
    $region12: #{net1d_forward.1} parent=1 // pred_region
      _
    $region13: #{net1d_forward.1} parent=1 // pred_fallthru
      _
    // Predicated region
    $region14: #{net1d_forward.1} parent=1 // pred_check
      _
    $region15: #{net1d_forward.1} parent=1 // pred_check_branch
      %26 = sbr.rel (0) target = $region17
    $region16: #{net1d_forward.1} parent=1 // pred_region
      %27 = dma.done [#allocation5], 16
    $region17: #{net1d_forward.1} parent=1 // pred_fallthru
      _
    %28 = sfence
    %v29 = vld [vmem:[%s2] sm:$0xff]
    %s30 = sld [smem:[#allocation3]]
    %v31 = vstv %s30
    %v32 = vmul.f32 %v31, %v29
    %s33 = sld [smem:[#allocation3 + $0x1]]
    %34 = vrot.lane.b32.xlu0 %v29, 127
    %v35 = vpop.permute.xlu0 %34
    %v36 = vstv %s33
    %v37 = vmul.f32 %v36, %v35
    %v38 = vadd.f32 %v32, %v37
    %s39 = sld [smem:[#allocation3 + $0x2]]
    %40 = vrot.lane.b32.xlu0 %v29, 126
    %v41 = vpop.permute.xlu0 %40
    %v42 = vstv %s39
    %v43 = vmul.f32 %v42, %v41
    %v44 = vadd.f32 %v38, %v43
    %s45 = sld [smem:[#allocation2]]
    %v46 = vstv %s45
    %v47 = vadd.f32 %v44, %v46
    %v48 = vxor.u32 %v47, 2147483648
    %v49 = vmul.f32 %v48, 1.442695
    %v50 = vpow.pop %v49
    %v51 = vadd.f32 %v50, 1.0
    %v52 = vrcp.pop %v51
    %v53 = vmul.f32 1.0, %v52
    %54 = vst [vmem:[#allocation6] sm:$0xff] %v53
    // Predicated region
    $region18: #{net1d_forward.1} parent=1 // pred_check
      _
    $region19: #{net1d_forward.1} parent=1 // pred_check_branch
      %56 = sbr.rel (0) target = $region21
    $region20: #{net1d_forward.1} parent=1 // pred_region
      %s58 = ssub.s32 128, 32
      %59 = vsyncadd [#allocation4], %s58
      %s60 = sshll.u32 [#allocation6], 4
      %s61 = int_to_ptr.vmem [resolvable:$true] %s60
      %66 = dma.vmem_to_hbm [thread:$0]  %s61, 32, %s3, [#allocation4], 32, 32, 2
    $region21: #{net1d_forward.1} parent=1 // pred_fallthru
      _
    // Predicated region
    $region22: #{net1d_forward.1} parent=1 // pred_check
      _
    $region23: #{net1d_forward.1} parent=1 // pred_check_branch
      %68 = sbr.rel (0) target = $region25
    $region24: #{net1d_forward.1} parent=1 // pred_region
      %69 = dma.done [#allocation4], 128
    $region25: #{net1d_forward.1} parent=1 // pred_fallthru
      _
    %70 = vsyncpa [#allocation4], 1
    %71 = vsyncpa [#allocation5], 1

</llo_original>
